<compile_context>
chip_gen: v7x
topology: tpu7x:2x2x1
jax: 0.10.0
libtpu: 0.0.40
codegen_flags: <defaults>
</compile_context>

<pallas_src>
import functools

import jax
import jax.numpy as jnp
from jax.experimental import pallas as pl
from jax.experimental.pallas import tpu as pltpu


def _mlgru_kernel(x_ref, w_ref, b_ref, o_ref, h_ref, *, eps):
    """Processes one (batch_block, hidden_block, time_block) tile.

    x_ref: (tb, tt, D)  input block (any float dtype; upcast to f32 inside)
    w_ref: (3, D, th)   bf16  [sign(W_f).T | sign(W_c).T | sign(W_g).T] H-slice
    b_ref: (3, 1, th)   f32   [b_f | b_c | b_g] H-slice
    o_ref: (tb, tt, th) output block
    h_ref: (tb, 1, th)  f32 recurrent hidden state (persists across time blocks)
    """
    tb, tt, D = x_ref.shape
    th = h_ref.shape[-1]

    # Reset the hidden state at the start of each (batch, hidden) tile's sweep
    # over time (time is the innermost grid axis).
    @pl.when(pl.program_id(2) == 0)
    def _():
        h_ref[...] = jnp.zeros_like(h_ref)

    x = x_ref[...].astype(jnp.float32)  # (tb, tt, D)

    # ---- time-parallel part -------------------------------------------------
    # rms_norm (as defined in the reference module: mean-centered, population
    # variance) per row.
    mean = jnp.mean(x, axis=-1, keepdims=True)
    centered = x - mean
    var = jnp.mean(centered * centered, axis=-1, keepdims=True)
    y = centered * jax.lax.rsqrt(var + eps)

    # activation_quant: keep integer codes q = round(127*y/max|y|) and the
    # per-row inverse scale; rescale AFTER the matmul (exact: integer operands,
    # bf16 represents |q| <= 127 and the {-1,0,1} weights exactly).
    max_abs = jnp.maximum(jnp.max(jnp.abs(y), axis=-1, keepdims=True), 1e-30)
    q = jnp.clip(jnp.round((127.0 / max_abs) * y), -128.0, 127.0)
    inv_s = max_abs * (1.0 / 127.0)  # (tb, tt, 1) == 1/s

    # One MXU matmul per gate over the whole time block (shared LHS).
    q2 = q.reshape(tb * tt, D).astype(jnp.bfloat16)

    def gate_linear(idx):
        acc = jnp.dot(q2, w_ref[idx], preferred_element_type=jnp.float32)
        return acc.reshape(tb, tt, th) * inv_s + b_ref[idx]

    f_lin = gate_linear(0)
    c_lin = gate_linear(1)
    g_lin = gate_linear(2)

    f_all = jax.nn.sigmoid(f_lin)
    c_all = c_lin * jax.nn.sigmoid(c_lin)          # SiLU
    g_all = jax.nn.sigmoid(g_lin)
    u_all = (1.0 - f_all) * c_all                  # time-parallel

    # ---- log-depth scan over time -------------------------------------------
    # h_t = f_t * h_{t-1} + u_t  as prefix composition of affine maps.
    # Hillis–Steele: offsets d = 1, 2, 4, ...; identity pad (F=1, U=0) for t<d.
    F = f_all
    U = u_all
    d = 1
    while d < tt:
        Fe = jnp.concatenate(
            [jnp.ones((tb, d, th), jnp.float32), F[:, : tt - d, :]], axis=1)
        Ue = jnp.concatenate(
            [jnp.zeros((tb, d, th), jnp.float32), U[:, : tt - d, :]], axis=1)
        F, U = F * Fe, F * Ue + U
        d *= 2

    h_prev = h_ref[...]                 # (tb, 1, th), broadcasts over time
    h_all = F * h_prev + U              # (tb, tt, th)

    # One dense bulk store of the whole output block.
    o_ref[...] = (g_all * h_all).astype(o_ref.dtype)
    h_ref[...] = h_all[:, tt - 1:tt, :]


def mlgru_layer_pallas(x, W_f, W_c, W_g, b_f, b_c, b_g, eps=1e-8,
                       time_block=None, batch_block=None, hidden_block=None,
                       vmem_limit_bytes=None, out_dtype=None):
    """x: (batch, seq, input); W_*: (hidden, input); b_*: (hidden,)."""
    B, S, D = x.shape
    H = W_f.shape[0]
    out_dtype = x.dtype if out_dtype is None else out_dtype

    # Time block: large by default (fills the MXU, amortises per-step overhead).
    if time_block is not None:
        tt = time_block
    else:
        tt = S if S <= 128 else 128          # S (full) or a multiple of 8

    # Batch block: split across 2 so v7x megacore gets both TCs busy.
    if batch_block is not None:
        tb = batch_block
    elif B >= 2:
        tb = (B + 1) // 2
    else:
        tb = B

    # Hidden block: full H unless tiling is requested (must be mult. of 128).
    th = hidden_block if hidden_block is not None else H

    # Ternarize + transpose + stack weights once (constant across the grid).
    # Layout (3, D, H): one H-tile selects the same slice of all three gates.
    w3 = jnp.stack(
        [jnp.sign(W_f).T, jnp.sign(W_c).T, jnp.sign(W_g).T], axis=0
    ).astype(jnp.bfloat16)                                        # (3, D, H)
    b3 = jnp.stack([b_f, b_c, b_g], axis=0).reshape(3, 1, H).astype(jnp.float32)

    kernel = functools.partial(_mlgru_kernel, eps=float(eps))

    grid = (pl.cdiv(B, tb), pl.cdiv(H, th), pl.cdiv(S, tt))

    return pl.pallas_call(
        kernel,
        out_shape=jax.ShapeDtypeStruct((B, S, H), out_dtype),
        grid_spec=pltpu.PrefetchScalarGridSpec(
            num_scalar_prefetch=0,
            grid=grid,
            in_specs=[
                pl.BlockSpec((tb, tt, D), lambda b, h, t: (b, t, 0)),   # x
                pl.BlockSpec((3, D, th), lambda b, h, t: (0, 0, h)),    # weights
                pl.BlockSpec((3, 1, th), lambda b, h, t: (0, 0, h)),    # biases
            ],
            out_specs=pl.BlockSpec((tb, tt, th), lambda b, h, t: (b, t, h)),
            scratch_shapes=[pltpu.VMEM((tb, 1, th), jnp.float32)],      # h state
        ),
        compiler_params=pltpu.CompilerParams(
            # Batch and hidden tiles are independent ("parallel", usable by
            # v7x megacore); the time axis carries the recurrence ("arbitrary").
            dimension_semantics=("parallel", "parallel", "arbitrary"),
            vmem_limit_bytes=vmem_limit_bytes,
        ),
    )(x, w3, b3)


def mlgru_layer_ref(x, W_f, W_c, W_g, b_f, b_c, b_g, eps=1e-8):
    """Pure-JAX reference mirroring the PyTorch module."""
    B, S, D = x.shape
    wf_t = jnp.sign(W_f).T
    wc_t = jnp.sign(W_c).T
    wg_t = jnp.sign(W_g).T
    h = jnp.zeros((B, W_f.shape[0]), jnp.float32)
    outs = []
    for t in range(S):
        x_t = x[:, t, :]
        mean = jnp.mean(x_t, axis=-1, keepdims=True)
        var = jnp.mean((x_t - mean) ** 2, axis=-1, keepdims=True)
        y = (x_t - mean) / jnp.sqrt(var + eps)
        s = 127.0 / jnp.max(jnp.abs(y), axis=-1, keepdims=True)
        yq = jnp.clip(jnp.round(s * y), -128.0, 127.0) / s
        f = jax.nn.sigmoid(yq @ wf_t + b_f)
        c_lin = yq @ wc_t + b_c
        c = c_lin * jax.nn.sigmoid(c_lin)
        g = jax.nn.sigmoid(yq @ wg_t + b_g)
        h = f * h + (1.0 - f) * c
        outs.append((g * h)[:, None, :])
    return jnp.concatenate(outs, axis=1)


if __name__ == "__main__":
    batch, seq, input_size, hidden_size = 4, 16, 32, 32

    key = jax.random.PRNGKey(0)
    kx, kf, kc, kg = jax.random.split(key, 4)

    x = jax.random.normal(kx, (batch, seq, input_size), dtype=jnp.float32)
    W_f = jax.random.normal(kf, (hidden_size, input_size), dtype=jnp.float32) * 0.01
    W_c = jax.random.normal(kc, (hidden_size, input_size), dtype=jnp.float32) * 0.01
    W_g = jax.random.normal(kg, (hidden_size, input_size), dtype=jnp.float32) * 0.01
    b_f = jnp.zeros((hidden_size,), jnp.float32)
    b_c = jnp.zeros((hidden_size,), jnp.float32)
    b_g = jnp.zeros((hidden_size,), jnp.float32)

    ref = mlgru_layer_ref(x, W_f, W_c, W_g, b_f, b_c, b_g)

    # Default tiling: whole sequence in one time block, batch split in two.
    out = mlgru_layer_pallas(x, W_f, W_c, W_g, b_f, b_c, b_g)
    out = jax.block_until_ready(out)
    assert out.shape == (batch, seq, hidden_size)
    assert jnp.allclose(out, ref, atol=2e-4, rtol=2e-4), "mismatch (default tiling)"

    # Exercise the cross-time-block hidden-state carry (2 time blocks).
    out2 = mlgru_layer_pallas(x, W_f, W_c, W_g, b_f, b_c, b_g,
                              time_block=8, batch_block=batch)
    out2 = jax.block_until_ready(out2)
    assert jnp.allclose(out2, ref, atol=2e-4, rtol=2e-4), "mismatch (time-blocked)"

    print("KERNEL_OK")
</pallas_src>

<mosaic_0001>
module attributes {stable_mosaic.version = 11 : i64} {
  func.func @_mlgru_kernel(%arg0: i32, %arg1: i32, %arg2: i32, %arg3: memref<2x16x32xf32, #tpu.memory_space<vmem>>, %arg4: memref<3x32x32xbf16, #tpu.memory_space<vmem>>, %arg5: memref<3x1x32xf32, #tpu.memory_space<vmem>>, %arg6: memref<2x16x32xf32, #tpu.memory_space<vmem>>, %arg7: memref<2x1x32xf32, #tpu.memory_space<vmem>>) attributes {dimension_semantics = [#tpu.dimension_semantics<parallel>, #tpu.dimension_semantics<parallel>, #tpu.dimension_semantics<arbitrary>], iteration_bounds = array<i64: 2, 1, 1>, scalar_prefetch = 0 : i64, scratch_operands = 1 : i64, tpu.core_type = #tpu.core_type<tc>, window_params = [{transform_indices = @transform_0, window_bounds = array<i64: 2, 16, 32>}, {transform_indices = @transform_1, window_bounds = array<i64: 3, 32, 32>}, {transform_indices = @transform_2, window_bounds = array<i64: 3, 1, 32>}, {transform_indices = @transform_3, window_bounds = array<i64: 2, 16, 32>}]} {
    %c0_i32 = arith.constant 0 : i32
    %0 = arith.cmpi eq, %arg2, %c0_i32 : i32
    %1 = arith.extui %0 : i1 to i32
    %c0_i32_0 = arith.constant 0 : i32
    %2 = arith.cmpi ne, %1, %c0_i32_0 : i32
    scf.if %2 {
      %cst_53 = arith.constant 0.000000e+00 : f32
      %134 = vector.broadcast %cst_53 : f32 to vector<2x1x32xf32>
      %c0_54 = arith.constant 0 : index
      %c0_55 = arith.constant 0 : index
      %c0_56 = arith.constant 0 : index
      %135 = vector.load %arg7[%c0_54, %c0_55, %c0_56] : memref<2x1x32xf32, #tpu.memory_space<vmem>>, vector<2x1x32xf32>
      tpu.vector_store %arg7[%c0_54, %c0_55, %c0_56], %134 {strides = array<i32>} : memref<2x1x32xf32, #tpu.memory_space<vmem>>, vector<2x1x32xf32>,
    } else {
    }
    %c0 = arith.constant 0 : index
    %c0_1 = arith.constant 0 : index
    %c0_2 = arith.constant 0 : index
    %3 = vector.load %arg3[%c0, %c0_1, %c0_2] : memref<2x16x32xf32, #tpu.memory_space<vmem>>, vector<2x16x32xf32>
    %cst = arith.constant dense<0.000000e+00> : vector<2x16xf32>
    %4 = vector.multi_reduction <add>, %3, %cst [2] : vector<2x16x32xf32> to vector<2x16xf32>
    %5 = vector.shape_cast %4 : vector<2x16xf32> to vector<2x16x1xf32>
    %cst_3 = arith.constant 3.200000e+01 : f32
    %6 = vector.broadcast %cst_3 : f32 to vector<2x16x1xf32>
    %7 = arith.divf %5, %6 : vector<2x16x1xf32>
    %8 = vector.broadcast %7 : vector<2x16x1xf32> to vector<2x16x32xf32>
    %9 = arith.subf %3, %8 : vector<2x16x32xf32>
    %10 = arith.mulf %9, %9 : vector<2x16x32xf32>
    %cst_4 = arith.constant dense<0.000000e+00> : vector<2x16xf32>
    %11 = vector.multi_reduction <add>, %10, %cst_4 [2] : vector<2x16x32xf32> to vector<2x16xf32>
    %12 = vector.shape_cast %11 : vector<2x16xf32> to vector<2x16x1xf32>
    %cst_5 = arith.constant 3.200000e+01 : f32
    %13 = vector.broadcast %cst_5 : f32 to vector<2x16x1xf32>
    %14 = arith.divf %12, %13 : vector<2x16x1xf32>
    %cst_6 = arith.constant 9.99999993E-9 : f32
    %15 = vector.broadcast %cst_6 : f32 to vector<2x16x1xf32>
    %16 = arith.addf %14, %15 : vector<2x16x1xf32>
    %17 = math.rsqrt %16 : vector<2x16x1xf32>
    %18 = vector.broadcast %17 : vector<2x16x1xf32> to vector<2x16x32xf32>
    %19 = arith.mulf %9, %18 : vector<2x16x32xf32>
    %20 = math.absf %19 : vector<2x16x32xf32>
    %cst_7 = arith.constant dense<0xFF800000> : vector<2x16xf32>
    %21 = vector.multi_reduction <maximumf>, %20, %cst_7 [2] : vector<2x16x32xf32> to vector<2x16xf32>
    %22 = vector.shape_cast %21 : vector<2x16xf32> to vector<2x16x1xf32>
    %cst_8 = arith.constant 1.000000e-30 : f32
    %23 = vector.broadcast %cst_8 : f32 to vector<2x16x1xf32>
    %24 = arith.maximumf %22, %23 : vector<2x16x1xf32>
    %cst_9 = arith.constant 1.270000e+02 : f32
    %25 = vector.broadcast %cst_9 : f32 to vector<2x16x1xf32>
    %26 = arith.divf %25, %24 : vector<2x16x1xf32>
    %27 = vector.broadcast %26 : vector<2x16x1xf32> to vector<2x16x32xf32>
    %28 = arith.mulf %27, %19 : vector<2x16x32xf32>
    %29 = math.roundeven %28 : vector<2x16x32xf32>
    %cst_10 = arith.constant -1.280000e+02 : f32
    %cst_11 = arith.constant 1.270000e+02 : f32
    %30 = vector.broadcast %cst_10 : f32 to vector<2x16x32xf32>
    %31 = arith.maximumf %30, %29 : vector<2x16x32xf32>
    %32 = vector.broadcast %cst_11 : f32 to vector<2x16x32xf32>
    %33 = arith.minimumf %32, %31 : vector<2x16x32xf32>
    %cst_12 = arith.constant 0.00787401571 : f32
    %34 = vector.broadcast %cst_12 : f32 to vector<2x16x1xf32>
    %35 = arith.mulf %24, %34 : vector<2x16x1xf32>
    %36 = vector.shape_cast %33 : vector<2x16x32xf32> to vector<32x32xf32>
    %37 = arith.truncf %36 : vector<32x32xf32> to vector<32x32xbf16>
    %c0_13 = arith.constant 0 : index
    %c0_14 = arith.constant 0 : index
    %c0_15 = arith.constant 0 : index
    %38 = vector.load %arg4[%c0_13, %c0_14, %c0_15] : memref<3x32x32xbf16, #tpu.memory_space<vmem>>, vector<1x32x32xbf16>
    %39 = vector.shape_cast %38 : vector<1x32x32xbf16> to vector<32x32xbf16>
    %cst_16 = arith.constant dense<0.000000e+00> : vector<32x32xf32>
    %40 = tpu.matmul %37, %39, %cst_16 {dimension_numbers = #tpu.dot_dimension_numbers<[1], [0], [0], [1], [0, 0, 1, 1], [], []>} : vector<32x32xbf16>, vector<32x32xbf16>, vector<32x32xf32> -> vector<32x32xf32>
    %41 = vector.shape_cast %40 : vector<32x32xf32> to vector<2x16x32xf32>
    %42 = vector.broadcast %35 : vector<2x16x1xf32> to vector<2x16x32xf32>
    %43 = arith.mulf %41, %42 : vector<2x16x32xf32>
    %c0_17 = arith.constant 0 : index
    %c0_18 = arith.constant 0 : index
    %c0_19 = arith.constant 0 : index
    %44 = vector.load %arg5[%c0_17, %c0_18, %c0_19] : memref<3x1x32xf32, #tpu.memory_space<vmem>>, vector<1x1x32xf32>
    %45 = vector.shape_cast %44 : vector<1x1x32xf32> to vector<1x32xf32>
    %46 = vector.shape_cast %45 : vector<1x32xf32> to vector<1x1x32xf32>
    %47 = vector.broadcast %46 : vector<1x1x32xf32> to vector<2x16x32xf32>
    %48 = arith.addf %43, %47 : vector<2x16x32xf32>
    %c1 = arith.constant 1 : index
    %c0_20 = arith.constant 0 : index
    %c0_21 = arith.constant 0 : index
    %49 = vector.load %arg4[%c1, %c0_20, %c0_21] : memref<3x32x32xbf16, #tpu.memory_space<vmem>>, vector<1x32x32xbf16>
    %50 = vector.shape_cast %49 : vector<1x32x32xbf16> to vector<32x32xbf16>
    %cst_22 = arith.constant dense<0.000000e+00> : vector<32x32xf32>
    %51 = tpu.matmul %37, %50, %cst_22 {dimension_numbers = #tpu.dot_dimension_numbers<[1], [0], [0], [1], [0, 0, 1, 1], [], []>} : vector<32x32xbf16>, vector<32x32xbf16>, vector<32x32xf32> -> vector<32x32xf32>
    %52 = vector.shape_cast %51 : vector<32x32xf32> to vector<2x16x32xf32>
    %53 = vector.broadcast %35 : vector<2x16x1xf32> to vector<2x16x32xf32>
    %54 = arith.mulf %52, %53 : vector<2x16x32xf32>
    %c1_23 = arith.constant 1 : index
    %c0_24 = arith.constant 0 : index
    %c0_25 = arith.constant 0 : index
    %55 = vector.load %arg5[%c1_23, %c0_24, %c0_25] : memref<3x1x32xf32, #tpu.memory_space<vmem>>, vector<1x1x32xf32>
    %56 = vector.shape_cast %55 : vector<1x1x32xf32> to vector<1x32xf32>
    %57 = vector.shape_cast %56 : vector<1x32xf32> to vector<1x1x32xf32>
    %58 = vector.broadcast %57 : vector<1x1x32xf32> to vector<2x16x32xf32>
    %59 = arith.addf %54, %58 : vector<2x16x32xf32>
    %c2 = arith.constant 2 : index
    %c0_26 = arith.constant 0 : index
    %c0_27 = arith.constant 0 : index
    %60 = vector.load %arg4[%c2, %c0_26, %c0_27] : memref<3x32x32xbf16, #tpu.memory_space<vmem>>, vector<1x32x32xbf16>
    %61 = vector.shape_cast %60 : vector<1x32x32xbf16> to vector<32x32xbf16>
    %cst_28 = arith.constant dense<0.000000e+00> : vector<32x32xf32>
    %62 = tpu.matmul %37, %61, %cst_28 {dimension_numbers = #tpu.dot_dimension_numbers<[1], [0], [0], [1], [0, 0, 1, 1], [], []>} : vector<32x32xbf16>, vector<32x32xbf16>, vector<32x32xf32> -> vector<32x32xf32>
    %63 = vector.shape_cast %62 : vector<32x32xf32> to vector<2x16x32xf32>
    %64 = vector.broadcast %35 : vector<2x16x1xf32> to vector<2x16x32xf32>
    %65 = arith.mulf %63, %64 : vector<2x16x32xf32>
    %c2_29 = arith.constant 2 : index
    %c0_30 = arith.constant 0 : index
    %c0_31 = arith.constant 0 : index
    %66 = vector.load %arg5[%c2_29, %c0_30, %c0_31] : memref<3x1x32xf32, #tpu.memory_space<vmem>>, vector<1x1x32xf32>
    %67 = vector.shape_cast %66 : vector<1x1x32xf32> to vector<1x32xf32>
    %68 = vector.shape_cast %67 : vector<1x32xf32> to vector<1x1x32xf32>
    %69 = vector.broadcast %68 : vector<1x1x32xf32> to vector<2x16x32xf32>
    %70 = arith.addf %65, %69 : vector<2x16x32xf32>
    %71 = arith.negf %48 : vector<2x16x32xf32>
    %72 = math.exp %71 : vector<2x16x32xf32>
    %cst_32 = arith.constant 1.000000e+00 : f32
    %73 = vector.broadcast %cst_32 : f32 to vector<2x16x32xf32>
    %74 = arith.addf %73, %72 : vector<2x16x32xf32>
    %75 = arith.divf %73, %74 : vector<2x16x32xf32>
    %76 = arith.negf %59 : vector<2x16x32xf32>
    %77 = math.exp %76 : vector<2x16x32xf32>
    %cst_33 = arith.constant 1.000000e+00 : f32
    %78 = vector.broadcast %cst_33 : f32 to vector<2x16x32xf32>
    %79 = arith.addf %78, %77 : vector<2x16x32xf32>
    %80 = arith.divf %78, %79 : vector<2x16x32xf32>
    %81 = arith.mulf %59, %80 : vector<2x16x32xf32>
    %82 = arith.negf %70 : vector<2x16x32xf32>
    %83 = math.exp %82 : vector<2x16x32xf32>
    %cst_34 = arith.constant 1.000000e+00 : f32
    %84 = vector.broadcast %cst_34 : f32 to vector<2x16x32xf32>
    %85 = arith.addf %84, %83 : vector<2x16x32xf32>
    %86 = arith.divf %84, %85 : vector<2x16x32xf32>
    %cst_35 = arith.constant 1.000000e+00 : f32
    %87 = vector.broadcast %cst_35 : f32 to vector<2x16x32xf32>
    %88 = arith.subf %87, %75 : vector<2x16x32xf32>
    %89 = arith.mulf %88, %81 : vector<2x16x32xf32>
    %cst_36 = arith.constant 1.000000e+00 : f32
    %90 = vector.broadcast %cst_36 : f32 to vector<2x1x32xf32>
    %91 = vector.extract_strided_slice %75 {offsets = [0, 0, 0], sizes = [2, 15, 32], strides = [1, 1, 1]} : vector<2x16x32xf32> to vector<2x15x32xf32>
    %92 = tpu.concatenate %90, %91 in 1 : vector<2x1x32xf32>, vector<2x15x32xf32> -> vector<2x16x32xf32>
    %cst_37 = arith.constant 0.000000e+00 : f32
    %93 = vector.broadcast %cst_37 : f32 to vector<2x1x32xf32>
    %94 = vector.extract_strided_slice %89 {offsets = [0, 0, 0], sizes = [2, 15, 32], strides = [1, 1, 1]} : vector<2x16x32xf32> to vector<2x15x32xf32>
    %95 = tpu.concatenate %93, %94 in 1 : vector<2x1x32xf32>, vector<2x15x32xf32> -> vector<2x16x32xf32>
    %96 = arith.mulf %75, %92 : vector<2x16x32xf32>
    %97 = arith.mulf %75, %95 : vector<2x16x32xf32>
    %98 = arith.addf %97, %89 : vector<2x16x32xf32>
    %cst_38 = arith.constant 1.000000e+00 : f32
    %99 = vector.broadcast %cst_38 : f32 to vector<2x2x32xf32>
    %100 = vector.extract_strided_slice %96 {offsets = [0, 0, 0], sizes = [2, 14, 32], strides = [1, 1, 1]} : vector<2x16x32xf32> to vector<2x14x32xf32>
    %101 = tpu.concatenate %99, %100 in 1 : vector<2x2x32xf32>, vector<2x14x32xf32> -> vector<2x16x32xf32>
    %cst_39 = arith.constant 0.000000e+00 : f32
    %102 = vector.broadcast %cst_39 : f32 to vector<2x2x32xf32>
    %103 = vector.extract_strided_slice %98 {offsets = [0, 0, 0], sizes = [2, 14, 32], strides = [1, 1, 1]} : vector<2x16x32xf32> to vector<2x14x32xf32>
    %104 = tpu.concatenate %102, %103 in 1 : vector<2x2x32xf32>, vector<2x14x32xf32> -> vector<2x16x32xf32>
    %105 = arith.mulf %96, %101 : vector<2x16x32xf32>
    %106 = arith.mulf %96, %104 : vector<2x16x32xf32>
    %107 = arith.addf %106, %98 : vector<2x16x32xf32>
    %cst_40 = arith.constant 1.000000e+00 : f32
    %108 = vector.broadcast %cst_40 : f32 to vector<2x4x32xf32>
    %109 = vector.extract_strided_slice %105 {offsets = [0, 0, 0], sizes = [2, 12, 32], strides = [1, 1, 1]} : vector<2x16x32xf32> to vector<2x12x32xf32>
    %110 = tpu.concatenate %108, %109 in 1 : vector<2x4x32xf32>, vector<2x12x32xf32> -> vector<2x16x32xf32>
    %cst_41 = arith.constant 0.000000e+00 : f32
    %111 = vector.broadcast %cst_41 : f32 to vector<2x4x32xf32>
    %112 = vector.extract_strided_slice %107 {offsets = [0, 0, 0], sizes = [2, 12, 32], strides = [1, 1, 1]} : vector<2x16x32xf32> to vector<2x12x32xf32>
    %113 = tpu.concatenate %111, %112 in 1 : vector<2x4x32xf32>, vector<2x12x32xf32> -> vector<2x16x32xf32>
    %114 = arith.mulf %105, %110 : vector<2x16x32xf32>
    %115 = arith.mulf %105, %113 : vector<2x16x32xf32>
    %116 = arith.addf %115, %107 : vector<2x16x32xf32>
    %cst_42 = arith.constant 1.000000e+00 : f32
    %117 = vector.broadcast %cst_42 : f32 to vector<2x8x32xf32>
    %118 = vector.extract_strided_slice %114 {offsets = [0, 0, 0], sizes = [2, 8, 32], strides = [1, 1, 1]} : vector<2x16x32xf32> to vector<2x8x32xf32>
    %119 = tpu.concatenate %117, %118 in 1 : vector<2x8x32xf32>, vector<2x8x32xf32> -> vector<2x16x32xf32>
    %cst_43 = arith.constant 0.000000e+00 : f32
    %120 = vector.broadcast %cst_43 : f32 to vector<2x8x32xf32>
    %121 = vector.extract_strided_slice %116 {offsets = [0, 0, 0], sizes = [2, 8, 32], strides = [1, 1, 1]} : vector<2x16x32xf32> to vector<2x8x32xf32>
    %122 = tpu.concatenate %120, %121 in 1 : vector<2x8x32xf32>, vector<2x8x32xf32> -> vector<2x16x32xf32>
    %123 = arith.mulf %114, %119 : vector<2x16x32xf32>
    %124 = arith.mulf %114, %122 : vector<2x16x32xf32>
    %125 = arith.addf %124, %116 : vector<2x16x32xf32>
    %c0_44 = arith.constant 0 : index
    %c0_45 = arith.constant 0 : index
    %c0_46 = arith.constant 0 : index
    %126 = vector.load %arg7[%c0_44, %c0_45, %c0_46] : memref<2x1x32xf32, #tpu.memory_space<vmem>>, vector<2x1x32xf32>
    %127 = vector.broadcast %126 : vector<2x1x32xf32> to vector<2x16x32xf32>
    %128 = arith.mulf %123, %127 : vector<2x16x32xf32>
    %129 = arith.addf %128, %125 : vector<2x16x32xf32>
    %130 = arith.mulf %86, %129 : vector<2x16x32xf32>
    %c0_47 = arith.constant 0 : index
    %c0_48 = arith.constant 0 : index
    %c0_49 = arith.constant 0 : index
    %131 = vector.load %arg6[%c0_47, %c0_48, %c0_49] : memref<2x16x32xf32, #tpu.memory_space<vmem>>, vector<2x16x32xf32>
    tpu.vector_store %arg6[%c0_47, %c0_48, %c0_49], %130 {strides = array<i32>} : memref<2x16x32xf32, #tpu.memory_space<vmem>>, vector<2x16x32xf32>,
    %132 = vector.extract_strided_slice %129 {offsets = [0, 15, 0], sizes = [2, 1, 32], strides = [1, 1, 1]} : vector<2x16x32xf32> to vector<2x1x32xf32>
    %c0_50 = arith.constant 0 : index
    %c0_51 = arith.constant 0 : index
    %c0_52 = arith.constant 0 : index
    %133 = vector.load %arg7[%c0_50, %c0_51, %c0_52] : memref<2x1x32xf32, #tpu.memory_space<vmem>>, vector<2x1x32xf32>
    tpu.vector_store %arg7[%c0_50, %c0_51, %c0_52], %132 {strides = array<i32>} : memref<2x1x32xf32, #tpu.memory_space<vmem>>, vector<2x1x32xf32>,
    return
  }
  func.func @transform_0(%arg0: i32, %arg1: i32, %arg2: i32) -> (i32, i32, i32) {
    %c0_i32 = arith.constant 0 : i32
    %c0_i32_0 = arith.constant 0 : i32
    return %arg0, %arg2, %c0_i32 : i32, i32, i32
  }
  func.func @transform_1(%arg0: i32, %arg1: i32, %arg2: i32) -> (i32, i32, i32) {
    %c0_i32 = arith.constant 0 : i32
    %c0_i32_0 = arith.constant 0 : i32
    %c0_i32_1 = arith.constant 0 : i32
    return %c0_i32, %c0_i32_0, %arg1 : i32, i32, i32
  }
  func.func @transform_2(%arg0: i32, %arg1: i32, %arg2: i32) -> (i32, i32, i32) {
    %c0_i32 = arith.constant 0 : i32
    %c0_i32_0 = arith.constant 0 : i32
    %c0_i32_1 = arith.constant 0 : i32
    return %c0_i32, %c0_i32_0, %arg1 : i32, i32, i32
  }
  func.func @transform_3(%arg0: i32, %arg1: i32, %arg2: i32) -> (i32, i32, i32) {
    %c0_i32 = arith.constant 0 : i32
    return %arg0, %arg2, %arg1 : i32, i32, i32
  }
}

</mosaic_0001>

<llo_original>
// kernel: tpu_custom_call.1
$region0: #{tpu_custom_call.1}
  #allocation0 [shape = 'u32[]', space=smem, size = 0x4, offset = 0x4, fixed_abs, tag = 'smem constant byte address 0x4 - core index']
  #allocation1 [shape = 'u32[144,128]{1,0:T(1,128)}', space=vmem, size = 0x12000, scoped, tag = 'internal scratch']
  #allocation2 [shape = 'f32[2,1,32]{2,1,0:T(1,128)}', space=vmem, size = 0x400, scoped, tag = 'scratch operand']
  %s0 = inlined_call_operand.hbm [shape: f32[4,16,32], index: 0, kind: input, shape index: {}]
  %s1 = inlined_call_operand.hbm [shape: bf16[3,32,32], index: 1, kind: input, shape index: {}]
  %s2 = inlined_call_operand.vmem [shape: f32[3,1,32], index: 2, kind: input, shape index: {}]
  %s3 = inlined_call_operand.hbm [shape: f32[4,16,32], index: 3, kind: output, shape index: {}]
  %s4 = sld [smem:[#allocation0]]
  $region57: #{tpu_custom_call.1} parent=0
    _
  %s6 = ssub.s32 1, %s4
  %s7 = scalar_select 0, %s6, %s4
  $region1: #{tpu_custom_call.1} parent=0
    #allocation3 [shape = 'u8[32768]{0}', space=vmem, size = 0x8000, scoped, tag = 'input window, operand 0']
    #allocation4 [shape = 's32[2]{0}', space=sflag, size = 0x8, scoped, tag = 'scoped memory for tpu_custom_call.1']
    #allocation5 [shape = 's32[2]{0}', space=sflag, size = 0x8, scoped, tag = 'scoped memory for tpu_custom_call.1']
    #allocation6 [shape = 'u8[24576]{0}', space=vmem, size = 0x6000, scoped, tag = 'input window, operand 1, single buffered']
    #allocation7 [shape = 's32[1]{0}', space=sflag, size = 0x4, scoped, tag = 'scoped memory for tpu_custom_call.1']
    #allocation8 [shape = 'u8[32768]{0}', space=vmem, size = 0x8000, scoped, tag = 'output window, operand 0']
    %8 = vsyncpa [#allocation4], 0
    %s9 = scalar_lea.sflag [#allocation4], 1
    %10 = vsyncpa %s9, 0
    %11 = vsyncpa [#allocation7], 0
    %12 = vsyncpa [#allocation5], 0
    %s13 = scalar_lea.sflag [#allocation5], 1
    %14 = vsyncpa %s13, 0
    loop: start=0, step=1, limit=4
    $region2: #{tpu_custom_call.1} parent=1 // loop_pre_header
      _
    $region3: #{tpu_custom_call.1} parent=1 // loop_header
      %s16 = sphi 0, %s20
      %p17 = scmp.ge.s32.totalorder %s16, 4
      %s23 = sphi 0, %s42
      %s24 = sphi 0, %s38
      %s25 = sphi 0, %s34
      %s26 = sphi 0, %s23
      %s27 = sphi 0, %s24
      %s28 = sphi 0, %s25
      %s29 = sphi 0, %s26
      %s30 = sphi 0, %s27
      %s31 = sphi 0, %s28
      %s47 = sphi 0, %s49
      %s50 = sphi 0, %s47
      %s51 = sphi 0, %s50
      %s67 = sphi 0, %s51
      %s73 = sphi 0, %s75
      %s76 = sphi 0, %s73
      %s77 = sphi 0, %s76
      %s93 = sphi 0, %s77
      %s99 = sphi 0, %s101
      %s102 = sphi 0, %s99
      %s103 = sphi 0, %s102
      %s119 = sphi 0, %s103
      %s129 = sphi 0, %s131
      %s132 = sphi 0, %s129
      %s133 = sphi 0, %s132
      %s149 = sphi 0, %s133
    $region4: #{tpu_custom_call.1} parent=1 // loop_header_branch
      %19 = sbr.rel (%p17) target = $region8
    $region5: #{tpu_custom_call.1} parent=1 // loop_body
      %s21 = ssub.s32 %s16, 1
      %s22 = ssub.s32 %s16, 2
      %s32 = sadd.s32 1, %s25
      %p33 = scmp.ge.s32.totalorder %s32, 1
      %s34 = scalar_select %p33, 0, %s32
      %s35 = sadd.s32 1, %s24
      %s36 = scalar_select %p33, %s35, %s24
      %p37 = scmp.ge.s32.totalorder %s36, 1
      %s38 = scalar_select %p37, 0, %s36
      %s39 = sadd.s32 1, %s23
      %s40 = scalar_select %p37, %s39, %s23
      %p41 = scmp.ge.s32.totalorder %s40, 2
      %s42 = scalar_select %p41, 0, %s40
      %s43 = ssub.s32 %s23, %s42
      %s44 = ssub.s32 %s25, %s34
      %s45 = sor.u32 %s43, %s44
      %p46 = scmp.eq.s32.totalorder %s45, 0
      %s48 = sadd.s32 %s47, 1
      %s49 = scalar_select %p46, %s47, %s48
      %p52 = pneg %p46
      %p53 = scmp.eq.s32.totalorder %s16, 1
      %p54 = por %p52, %p53
      %p55 = scmp.ne.s32.totalorder %s47, %s50
      %p56 = scmp.eq.s32.totalorder %s16, 0
      %p57 = por %p55, %p56
      %p58 = scmp.ne.s32.totalorder %s47, %s50
      %p59 = scmp.eq.s32.totalorder %s21, 1
      %p60 = por %p58, %p59
      %p61 = scmp.ne.s32.totalorder %s50, %s51
      %p62 = scmp.eq.s32.totalorder %s21, 0
      %p63 = por %p61, %p62
      %p64 = scmp.ne.s32.totalorder %s50, %s51
      %p65 = scmp.eq.s32.totalorder %s22, 1
      %p66 = por %p64, %p65
      %p68 = scmp.ne.s32.totalorder %s51, %s67
      %p69 = scmp.eq.s32.totalorder %s22, 0
      %p70 = por %p68, %p69
      %s71 = ssub.s32 %s24, %s38
      %p72 = scmp.eq.s32.totalorder %s71, 0
      %s74 = sadd.s32 %s73, 1
      %s75 = scalar_select %p72, %s73, %s74
      %p78 = pneg %p72
      %p79 = scmp.eq.s32.totalorder %s16, 1
      %p80 = por %p78, %p79
      %p81 = scmp.ne.s32.totalorder %s73, %s76
      %p82 = scmp.eq.s32.totalorder %s16, 0
      %p83 = por %p81, %p82
      %p84 = scmp.ne.s32.totalorder %s73, %s76
      %p85 = scmp.eq.s32.totalorder %s21, 1
      %p86 = por %p84, %p85
      %p87 = scmp.ne.s32.totalorder %s76, %s77
      %p88 = scmp.eq.s32.totalorder %s21, 0
      %p89 = por %p87, %p88
      %p90 = scmp.ne.s32.totalorder %s76, %s77
      %p91 = scmp.eq.s32.totalorder %s22, 1
      %p92 = por %p90, %p91
      %p94 = scmp.ne.s32.totalorder %s77, %s93
      %p95 = scmp.eq.s32.totalorder %s22, 0
      %p96 = por %p94, %p95
      %s97 = ssub.s32 %s24, %s38
      %p98 = scmp.eq.s32.totalorder %s97, 0
      %s100 = sadd.s32 %s99, 1
      %s101 = scalar_select %p98, %s99, %s100
      %p104 = pneg %p98
      %p105 = scmp.eq.s32.totalorder %s16, 1
      %p106 = por %p104, %p105
      %p107 = scmp.ne.s32.totalorder %s99, %s102
      %p108 = scmp.eq.s32.totalorder %s16, 0
      %p109 = por %p107, %p108
      %p110 = scmp.ne.s32.totalorder %s99, %s102
      %p111 = scmp.eq.s32.totalorder %s21, 1
      %p112 = por %p110, %p111
      %p113 = scmp.ne.s32.totalorder %s102, %s103
      %p114 = scmp.eq.s32.totalorder %s21, 0
      %p115 = por %p113, %p114
      %p116 = scmp.ne.s32.totalorder %s102, %s103
      %p117 = scmp.eq.s32.totalorder %s22, 1
      %p118 = por %p116, %p117
      %p120 = scmp.ne.s32.totalorder %s103, %s119
      %p121 = scmp.eq.s32.totalorder %s22, 0
      %p122 = por %p120, %p121
      %s123 = ssub.s32 %s23, %s42
      %s124 = ssub.s32 %s25, %s34
      %s125 = sor.u32 %s123, %s124
      %s126 = ssub.s32 %s24, %s38
      %s127 = sor.u32 %s125, %s126
      %p128 = scmp.eq.s32.totalorder %s127, 0
      %s130 = sadd.s32 %s129, 1
      %s131 = scalar_select %p128, %s129, %s130
      %p134 = pneg %p128
      %p135 = scmp.eq.s32.totalorder %s16, 1
      %p136 = por %p134, %p135
      %p137 = scmp.ne.s32.totalorder %s129, %s132
      %p138 = scmp.eq.s32.totalorder %s16, 0
      %p139 = por %p137, %p138
      %p140 = scmp.ne.s32.totalorder %s129, %s132
      %p141 = scmp.eq.s32.totalorder %s21, 1
      %p142 = por %p140, %p141
      %p143 = scmp.ne.s32.totalorder %s132, %s133
      %p144 = scmp.eq.s32.totalorder %s21, 0
      %p145 = por %p143, %p144
      %p146 = scmp.ne.s32.totalorder %s132, %s133
      %p147 = scmp.eq.s32.totalorder %s22, 1
      %p148 = por %p146, %p147
      %p150 = scmp.ne.s32.totalorder %s133, %s149
      %p151 = scmp.eq.s32.totalorder %s22, 0
      %p152 = por %p150, %p151
      %p153 = scmp.le.s32.totalorder 1, %s16
      %p154 = scmp.lt.s32.totalorder %s16, 3
      %p155 = pnand %p153, %p154
      %p156 = pneg %p155
      // Predicated region
      $region9: #{tpu_custom_call.1} parent=5 // pred_check
        _
      $region10: #{tpu_custom_call.1} parent=5 // pred_check_branch
        %158 = sbr.rel (%p155) target = $region12
      $region11: #{tpu_custom_call.1} parent=5 // pred_region
        %s159 = ssub.s32 %s16, 1
        // Predicated region
        $region13: #{tpu_custom_call.1} parent=11 // pred_check
          %p160 = pneg %p89
        $region14: #{tpu_custom_call.1} parent=11 // pred_check_branch
          %162 = sbr.rel (%p160) target = $region16
        $region15: #{tpu_custom_call.1} parent=11 // pred_region
          %s164 = ssub.s32 768, 768
          %165 = vsyncadd [#allocation7], %s164
          %s166 = smul.addr %s27, 64
          %s167 = scalar_lea.hbm %s1, %s166
          %s168 = sshll.u32 [#allocation6], 4
          %s169 = int_to_ptr.vmem [resolvable:$true] %s168
          %174 = dma.hbm_to_vmem [thread:$0]  %s167, 768, %s169, [#allocation7], 64, 64, 4
        $region16: #{tpu_custom_call.1} parent=11 // pred_fallthru
          _
        // Predicated region
        $region17: #{tpu_custom_call.1} parent=11 // pred_check
          %p175 = pneg %p115
        $region18: #{tpu_custom_call.1} parent=11 // pred_check_branch
          %177 = sbr.rel (%p175) target = $region20
        $region19: #{tpu_custom_call.1} parent=11 // pred_region
          %p178 = scmp.lt.s32.totalorder %s27, 0
          %s179 = scalar_select %p178, %s27, 0
          %s180 = scalar_lea.vmem %s2, %s179
        $region20: #{tpu_custom_call.1} parent=11 // pred_fallthru
          _
      $region12: #{tpu_custom_call.1} parent=5 // pred_fallthru
        _
      %p181 = scmp.lt.s32.totalorder %s16, 2
      // Predicated region
      $region21: #{tpu_custom_call.1} parent=5 // pred_check
        %p182 = pneg %p181
      $region22: #{tpu_custom_call.1} parent=5 // pred_check_branch
        %184 = sbr.rel (%p182) target = $region24
      $region23: #{tpu_custom_call.1} parent=5 // pred_region
        // Predicated region
        $region25: #{tpu_custom_call.1} parent=23 // pred_check
          %p185 = pneg %p57
        $region26: #{tpu_custom_call.1} parent=23 // pred_check_branch
          %187 = sbr.rel (%p185) target = $region28
        $region27: #{tpu_custom_call.1} parent=23 // pred_region
          %s188 = sand.u32 %s47, 1
          %s189 = scalar_lea.sflag [#allocation4], %s188
          %s190 = sand.u32 %s47, 1
          %s191 = smul.addr %s190, 32
          %s192 = scalar_lea.vmem [#allocation3], %s191
          %s193 = smul.u32 2, %s23
          %s194 = smul.u32 2, %s25
          %s196 = ssub.s32 512, 512
          %197 = vsyncadd %s189, %s196
          %s198 = smul.addr %s193, 2
          %s199 = sadd.s32 %s194, %s198
          %s200 = smul.addr %s199, 128
          %s201 = scalar_lea.hbm %s0, %s200
          %s202 = sshll.u32 %s192, 4
          %s203 = int_to_ptr.vmem [resolvable:$true] %s202
          %208 = dma.hbm_to_vmem [thread:$0]  %s201, 512, %s203, %s189, 128, 128, 8
        $region28: #{tpu_custom_call.1} parent=23 // pred_fallthru
          _
      $region24: #{tpu_custom_call.1} parent=5 // pred_fallthru
        _
      %p209 = scmp.le.s32.totalorder 1, %s16
      %p210 = scmp.lt.s32.totalorder %s16, 3
      %p211 = pnand %p209, %p210
      %p212 = pneg %p211
      // Predicated region
      $region29: #{tpu_custom_call.1} parent=5 // pred_check
        _
      $region30: #{tpu_custom_call.1} parent=5 // pred_check_branch
        %214 = sbr.rel (%p211) target = $region32
      $region31: #{tpu_custom_call.1} parent=5 // pred_region
        %s215 = ssub.s32 %s16, 1
        %s216 = sand.u32 %s50, 1
        %s217 = scalar_lea.sflag [#allocation4], %s216
        %s218 = sand.u32 %s50, 1
        %s219 = smul.addr %s218, 32
        %s220 = scalar_lea.vmem [#allocation3], %s219
        // Predicated region
        $region33: #{tpu_custom_call.1} parent=31 // pred_check
          %p221 = pneg %p63
        $region34: #{tpu_custom_call.1} parent=31 // pred_check_branch
          %223 = sbr.rel (%p221) target = $region36
        $region35: #{tpu_custom_call.1} parent=31 // pred_region
          %224 = dma.done %s217, 512
        $region36: #{tpu_custom_call.1} parent=31 // pred_fallthru
          _
        // Predicated region
        $region37: #{tpu_custom_call.1} parent=31 // pred_check
          %p225 = pneg %p89
        $region38: #{tpu_custom_call.1} parent=31 // pred_check_branch
          %227 = sbr.rel (%p225) target = $region40
        $region39: #{tpu_custom_call.1} parent=31 // pred_region
          %228 = dma.done [#allocation7], 768
        $region40: #{tpu_custom_call.1} parent=31 // pred_fallthru
          _
        %s229 = sand.u32 %s50, 1
        %s230 = scalar_lea.sflag [#allocation4], %s229
        %s231 = sand.u32 %s50, 1
        %s232 = smul.addr %s231, 32
        %s233 = scalar_lea.vmem [#allocation3], %s232
        %p234 = pneg %p63
        %p235 = pneg %p60
        %p236 = pneg %p89
        %p237 = pneg %p86
        %p238 = scmp.lt.s32.totalorder %s27, 0
        %s239 = scalar_select %p238, %s27, 0
        %s240 = scalar_lea.vmem %s2, %s239
        %p241 = pneg %p115
        %p242 = pneg %p112
        %p243 = pneg %p145
        %p244 = pneg %p142
        %s245 = sand.u32 %s132, 1
        %s246 = scalar_lea.sflag [#allocation5], %s245
        %s247 = sand.u32 %s132, 1
        %s248 = smul.addr %s247, 32
        %s249 = scalar_lea.vmem [#allocation8], %s248
        %s250 = smul.u32 2, %s26
        %s251 = smul.u32 2, %s28
        %p252 = scmp.lt.s32.totalorder %s27, 0
        %s253 = scalar_select %p252, %s27, 0
        %s254 = scalar_lea.vmem %s2, %s253
        %s255 = smul.u32 2, %s26
        %s256 = smul.u32 2, %s28
        %p258 = scmp.eq.s32.totalorder %s28, 0
        // Predicated region
        $region41: #{tpu_custom_call.1} parent=31 // pred_check
          %p259 = pneg %p258
        $region42: #{tpu_custom_call.1} parent=31 // pred_check_branch
          %261 = sbr.rel (%p259) target = $region44
        $region43: #{tpu_custom_call.1} parent=31 // pred_region
          %vm262 = vcmask 253952
          %263 = vst.msk [vmem:[#allocation2] sm:$0x1] %vm262, 0.0
          %264 = vst.msk [vmem:[#allocation2 + $0x1] sm:$0x1] %vm262, 0.0
        $region44: #{tpu_custom_call.1} parent=31 // pred_fallthru
          _
        %v265 = vld [vmem:[%s220] sm:$0xff]
        %v266 = vld [vmem:[%s220 + $0x8] sm:$0xff]
        %v267 = vld [vmem:[%s220 + $0x10] sm:$0xff]
        %v268 = vld [vmem:[%s220 + $0x18] sm:$0xff]
        %vm269 = vcmask 261120
        %v270 = vsel %vm269, %v265, 0.0
        %271 = vadd.xlane.f32.xlu0 %v270
        %v272 = vpop.xlane.xlu0 %271
        %v273 = vsel %vm269, %v266, 0.0
        %274 = vadd.xlane.f32.xlu0 %v273
        %v275 = vpop.xlane.xlu0 %274
        %v276 = vsel %vm269, %v267, 0.0
        %277 = vadd.xlane.f32.xlu0 %v276
        %v278 = vpop.xlane.xlu0 %277
        %v279 = vsel %vm269, %v268, 0.0
        %280 = vadd.xlane.f32.xlu0 %v279
        %v281 = vpop.xlane.xlu0 %280
        %v282 = vrcp.pop 32.0
        %v283 = vmul.f32 %v272, %v282
        %v284 = vmul.f32 %v275, %v282
        %v285 = vmul.f32 %v278, %v282
        %v286 = vmul.f32 %v281, %v282
        %v287 = vsub.f32 %v265, %v283
        %v288 = vsub.f32 %v266, %v284
        %v289 = vsub.f32 %v267, %v285
        %v290 = vsub.f32 %v268, %v286
        %v291 = vmul.f32 %v287, %v287
        %v292 = vmul.f32 %v288, %v288
        %v293 = vmul.f32 %v289, %v289
        %v294 = vmul.f32 %v290, %v290
        %v295 = vsel %vm269, %v291, 0.0
        %296 = vadd.xlane.f32.xlu0 %v295
        %v297 = vpop.xlane.xlu0 %296
        %v298 = vsel %vm269, %v292, 0.0
        %299 = vadd.xlane.f32.xlu0 %v298
        %v300 = vpop.xlane.xlu0 %299
        %v301 = vsel %vm269, %v293, 0.0
        %302 = vadd.xlane.f32.xlu0 %v301
        %v303 = vpop.xlane.xlu0 %302
        %v304 = vsel %vm269, %v294, 0.0
        %305 = vadd.xlane.f32.xlu0 %v304
        %v306 = vpop.xlane.xlu0 %305
        %v307 = vmul.f32 %v297, %v282
        %v308 = vmul.f32 %v300, %v282
        %v309 = vmul.f32 %v303, %v282
        %v310 = vmul.f32 %v306, %v282
        %v311 = vadd.f32 %v307, 1e-08
        %v312 = vadd.f32 %v308, 1e-08
        %v313 = vadd.f32 %v309, 1e-08
        %v314 = vadd.f32 %v310, 1e-08
        %v315 = vrsqrt.pop %v311
        %v316 = vrsqrt.pop %v312
        %v317 = vrsqrt.pop %v313
        %v318 = vrsqrt.pop %v314
        %v319 = vmul.f32 %v287, %v315
        %v320 = vmul.f32 %v288, %v316
        %v321 = vmul.f32 %v289, %v317
        %v322 = vmul.f32 %v290, %v318
        %v323 = vand.u32 2147483647, %v319
        %v324 = vand.u32 2147483647, %v320
        %v325 = vand.u32 2147483647, %v321
        %v326 = vand.u32 2147483647, %v322
        %v327 = vsel %vm269, %v323, -inf
        %328 = vmax.xlane.f32.xlu0 %v327
        %v329 = vpop.xlane.xlu0 %328
        %v330 = vsel %vm269, %v324, -inf
        %331 = vmax.xlane.f32.xlu0 %v330
        %v332 = vpop.xlane.xlu0 %331
        %v333 = vsel %vm269, %v325, -inf
        %334 = vmax.xlane.f32.xlu0 %v333
        %v335 = vpop.xlane.xlu0 %334
        %v336 = vsel %vm269, %v326, -inf
        %337 = vmax.xlane.f32.xlu0 %v336
        %v338 = vpop.xlane.xlu0 %337
        %v339 = vmax.f32 %v329, 1e-30
        %v340 = vmax.f32 %v332, 1e-30
        %v341 = vmax.f32 %v335, 1e-30
        %v342 = vmax.f32 %v338, 1e-30
        %v343 = vrcp.pop %v339
        %v344 = vmul.f32 127.0, %v343
        %v345 = vrcp.pop %v340
        %v346 = vmul.f32 127.0, %v345
        %v347 = vrcp.pop %v341
        %v348 = vmul.f32 127.0, %v347
        %v349 = vrcp.pop %v342
        %v350 = vmul.f32 127.0, %v349
        %v351 = vmul.f32 %v344, %v319
        %v352 = vmul.f32 %v346, %v320
        %v353 = vmul.f32 %v348, %v321
        %v354 = vmul.f32 %v350, %v322
        %v355 = vround.ne.pseudo %v351
        %v356 = vround.ne.pseudo %v352
        %v357 = vround.ne.pseudo %v353
        %v358 = vround.ne.pseudo %v354
        %v359 = vmax.f32 %v355, -128.0
        %v360 = vmax.f32 %v356, -128.0
        %v361 = vmax.f32 %v357, -128.0
        %v362 = vmax.f32 %v358, -128.0
        %v363 = vmin.f32 %v359, 127.0
        %v364 = vmin.f32 %v360, 127.0
        %v365 = vmin.f32 %v361, 127.0
        %v366 = vmin.f32 %v362, 127.0
        %v367 = vmul.f32 %v339, 0.007874016
        %v368 = vmul.f32 %v340, 0.007874016
        %v369 = vmul.f32 %v341, 0.007874016
        %v370 = vmul.f32 %v342, 0.007874016
        %v371 = vpack.c.bf16 %v364, %v363
        %v372 = vpack.c.bf16 %v366, %v365
        %v373 = vld [vmem:[#allocation6] sm:$0xf]
        %v374 = vld [vmem:[#allocation6 + $0x4] sm:$0xf]
        %v375 = vld [vmem:[#allocation6 + $0x8] sm:$0xf]
        %v376 = vld [vmem:[#allocation6 + $0xc] sm:$0xf]
        %v381 = vunpack.c.l.b16 %v373
        %v382 = vunpack.c.l.b16 %v374
        %v383 = vunpack.c.l.b16 %v375
        %v384 = vunpack.c.l.b16 %v376
        %v385 = vpack.c.b16 %v382, %v381
        %v386 = vpack.c.b16 %v384, %v383
        %v390 = vsel %vm269, %v371, 0
        %v393 = vsel %vm269, %v372, 0
        %395 = vmatprep.subr.bf16.mxu0 0
        %396 = vmatpush1.bf16.msra.mxu0 %v385
        %397 = vmatprep.subr.bf16.mxu0 0
        %398 = vmatpush1.bf16.msra.mxu0 %v386
        %399 = vmatprep.subr.bf16.mxu0 0
        %400 = vmatpush1.bf16.msra.mxu0 0
        %401 = vmatprep.subr.bf16.mxu0 0
        %402 = vmatpush1.bf16.msra.mxu0 0
        %403 = vmatprep.subr.bf16.mxu0 0
        %404 = vmatpush1.bf16.msra.mxu0 0
        %405 = vmatprep.subr.bf16.mxu0 0
        %406 = vmatpush1.bf16.msra.mxu0 0
        %407 = vmatprep.subr.bf16.mxu0 0
        %408 = vmatpush1.bf16.msra.mxu0 0
        %409 = vmatprep.subr.bf16.mxu0 0
        %410 = vmatpush1.bf16.msra.mxu0 0
        %411 = vmatprep.subr.bf16.mxu0 0
        %412 = vmatpush1.bf16.msra.mxu0 0
        %413 = vmatprep.subr.bf16.mxu0 0
        %414 = vmatpush1.bf16.msra.mxu0 0
        %415 = vmatprep.subr.bf16.mxu0 0
        %416 = vmatpush1.bf16.msra.mxu0 0
        %417 = vmatprep.subr.bf16.mxu0 0
        %418 = vmatpush1.bf16.msra.mxu0 0
        %419 = vmatprep.subr.bf16.mxu0 0
        %420 = vmatpush1.bf16.msra.mxu0 0
        %421 = vmatprep.subr.bf16.mxu0 0
        %422 = vmatpush1.bf16.msra.mxu0 0
        %423 = vmatprep.subr.bf16.mxu0 0
        %424 = vmatpush1.bf16.msra.mxu0 0
        %425 = vmatprep.subr.bf16.mxu0 0
        %426 = vmatpush1.bf16.msra.mxu0 0
        %427 = vmatprep.mubr.bf16.mxu0 0
        %428 = vmatmul.mubr.bf16.gmra.mrb[0].mxu0 %v390
        %v429 = vpop.f32.mrb[0].mxu0
        %v430 = vadd.f32 0.0, %v429
        %v431 = vpop.f32.mrb[0].mxu0
        %v432 = vpop.f32.mrb[0].mxu0
        %v433 = vadd.f32 0.0, %v432
        %v434 = vpop.f32.mrb[0].mxu0
        %435 = vmatprep.mubr.bf16.mxu0 0
        %436 = vmatmul.mubr.bf16.gmra.mrb[0].mxu0 %v393
        %v437 = vpop.f32.mrb[0].mxu0
        %v438 = vadd.f32 0.0, %v437
        %v439 = vpop.f32.mrb[0].mxu0
        %v440 = vpop.f32.mrb[0].mxu0
        %v441 = vadd.f32 0.0, %v440
        %v442 = vpop.f32.mrb[0].mxu0
        %443 = vdwg.mxu0
        %v444 = vmul.f32 %v430, %v367
        %v445 = vmul.f32 %v433, %v368
        %v446 = vmul.f32 %v438, %v369
        %v447 = vmul.f32 %v441, %v370
        %v448 = vld [vmem:[%s254] sm:$0x1]
        %v450 = vlaneseq
        %v451 = vshrl.u32 %v450, 7
        %v452 = vsub.s32 0, %v451
        %v453 = vrot.slane %v448, %v452
        %v455 = vadd.f32 %v444, %v453
        %v456 = vadd.f32 %v445, %v453
        %v457 = vadd.f32 %v446, %v453
        %v458 = vadd.f32 %v447, %v453
        %s459 = scalar_lea.vmem [#allocation6], 16
        %v460 = vld [vmem:[%s459] sm:$0xf]
        %v461 = vld [vmem:[%s459 + $0x4] sm:$0xf]
        %v462 = vld [vmem:[%s459 + $0x8] sm:$0xf]
        %v463 = vld [vmem:[%s459 + $0xc] sm:$0xf]
        %v468 = vunpack.c.l.b16 %v460
        %v469 = vunpack.c.l.b16 %v461
        %v470 = vunpack.c.l.b16 %v462
        %v471 = vunpack.c.l.b16 %v463
        %v472 = vpack.c.b16 %v469, %v468
        %v473 = vpack.c.b16 %v471, %v470
        %476 = vmatprep.subr.bf16.mxu0 0
        %477 = vmatpush1.bf16.msra.mxu0 %v472
        %478 = vmatprep.subr.bf16.mxu0 0
        %479 = vmatpush1.bf16.msra.mxu0 %v473
        %480 = vmatprep.subr.bf16.mxu0 0
        %481 = vmatpush1.bf16.msra.mxu0 0
        %482 = vmatprep.subr.bf16.mxu0 0
        %483 = vmatpush1.bf16.msra.mxu0 0
        %484 = vmatprep.subr.bf16.mxu0 0
        %485 = vmatpush1.bf16.msra.mxu0 0
        %486 = vmatprep.subr.bf16.mxu0 0
        %487 = vmatpush1.bf16.msra.mxu0 0
        %488 = vmatprep.subr.bf16.mxu0 0
        %489 = vmatpush1.bf16.msra.mxu0 0
        %490 = vmatprep.subr.bf16.mxu0 0
        %491 = vmatpush1.bf16.msra.mxu0 0
        %492 = vmatprep.subr.bf16.mxu0 0
        %493 = vmatpush1.bf16.msra.mxu0 0
        %494 = vmatprep.subr.bf16.mxu0 0
        %495 = vmatpush1.bf16.msra.mxu0 0
        %496 = vmatprep.subr.bf16.mxu0 0
        %497 = vmatpush1.bf16.msra.mxu0 0
        %498 = vmatprep.subr.bf16.mxu0 0
        %499 = vmatpush1.bf16.msra.mxu0 0
        %500 = vmatprep.subr.bf16.mxu0 0
        %501 = vmatpush1.bf16.msra.mxu0 0
        %502 = vmatprep.subr.bf16.mxu0 0
        %503 = vmatpush1.bf16.msra.mxu0 0
        %504 = vmatprep.subr.bf16.mxu0 0
        %505 = vmatpush1.bf16.msra.mxu0 0
        %506 = vmatprep.subr.bf16.mxu0 0
        %507 = vmatpush1.bf16.msra.mxu0 0
        %508 = vmatprep.mubr.bf16.mxu0 0
        %509 = vmatmul.mubr.bf16.gmra.mrb[0].mxu0 %v390
        %v510 = vpop.f32.mrb[0].mxu0
        %v511 = vadd.f32 0.0, %v510
        %v512 = vpop.f32.mrb[0].mxu0
        %v513 = vpop.f32.mrb[0].mxu0
        %v514 = vadd.f32 0.0, %v513
        %v515 = vpop.f32.mrb[0].mxu0
        %516 = vmatprep.mubr.bf16.mxu0 0
        %517 = vmatmul.mubr.bf16.gmra.mrb[0].mxu0 %v393
        %v518 = vpop.f32.mrb[0].mxu0
        %v519 = vadd.f32 0.0, %v518
        %v520 = vpop.f32.mrb[0].mxu0
        %v521 = vpop.f32.mrb[0].mxu0
        %v522 = vadd.f32 0.0, %v521
        %v523 = vpop.f32.mrb[0].mxu0
        %524 = vdwg.mxu0
        %v525 = vmul.f32 %v511, %v367
        %v526 = vmul.f32 %v514, %v368
        %v527 = vmul.f32 %v519, %v369
        %v528 = vmul.f32 %v522, %v370
        %s529 = scalar_lea.vmem %s254, 1
        %v530 = vld [vmem:[%s529] sm:$0x1]
        %v532 = vlaneseq
        %v533 = vshrl.u32 %v532, 7
        %v534 = vsub.s32 0, %v533
        %v535 = vrot.slane %v530, %v534
        %v537 = vadd.f32 %v525, %v535
        %v538 = vadd.f32 %v526, %v535
        %v539 = vadd.f32 %v527, %v535
        %v540 = vadd.f32 %v528, %v535
        %s541 = scalar_lea.vmem [#allocation6], 32
        %v542 = vld [vmem:[%s541] sm:$0xf]
        %v543 = vld [vmem:[%s541 + $0x4] sm:$0xf]
        %v544 = vld [vmem:[%s541 + $0x8] sm:$0xf]
        %v545 = vld [vmem:[%s541 + $0xc] sm:$0xf]
        %v550 = vunpack.c.l.b16 %v542
        %v551 = vunpack.c.l.b16 %v543
        %v552 = vunpack.c.l.b16 %v544
        %v553 = vunpack.c.l.b16 %v545
        %v554 = vpack.c.b16 %v551, %v550
        %v555 = vpack.c.b16 %v553, %v552
        %558 = vmatprep.subr.bf16.mxu0 0
        %559 = vmatpush1.bf16.msra.mxu0 %v554
        %560 = vmatprep.subr.bf16.mxu0 0
        %561 = vmatpush1.bf16.msra.mxu0 %v555
        %562 = vmatprep.subr.bf16.mxu0 0
        %563 = vmatpush1.bf16.msra.mxu0 0
        %564 = vmatprep.subr.bf16.mxu0 0
        %565 = vmatpush1.bf16.msra.mxu0 0
        %566 = vmatprep.subr.bf16.mxu0 0
        %567 = vmatpush1.bf16.msra.mxu0 0
        %568 = vmatprep.subr.bf16.mxu0 0
        %569 = vmatpush1.bf16.msra.mxu0 0
        %570 = vmatprep.subr.bf16.mxu0 0
        %571 = vmatpush1.bf16.msra.mxu0 0
        %572 = vmatprep.subr.bf16.mxu0 0
        %573 = vmatpush1.bf16.msra.mxu0 0
        %574 = vmatprep.subr.bf16.mxu0 0
        %575 = vmatpush1.bf16.msra.mxu0 0
        %576 = vmatprep.subr.bf16.mxu0 0
        %577 = vmatpush1.bf16.msra.mxu0 0
        %578 = vmatprep.subr.bf16.mxu0 0
        %579 = vmatpush1.bf16.msra.mxu0 0
        %580 = vmatprep.subr.bf16.mxu0 0
        %581 = vmatpush1.bf16.msra.mxu0 0
        %582 = vmatprep.subr.bf16.mxu0 0
        %583 = vmatpush1.bf16.msra.mxu0 0
        %584 = vmatprep.subr.bf16.mxu0 0
        %585 = vmatpush1.bf16.msra.mxu0 0
        %586 = vmatprep.subr.bf16.mxu0 0
        %587 = vmatpush1.bf16.msra.mxu0 0
        %588 = vmatprep.subr.bf16.mxu0 0
        %589 = vmatpush1.bf16.msra.mxu0 0
        %590 = vmatprep.mubr.bf16.mxu0 0
        %591 = vmatmul.mubr.bf16.gmra.mrb[0].mxu0 %v390
        %v592 = vpop.f32.mrb[0].mxu0
        %v593 = vadd.f32 0.0, %v592
        %v594 = vpop.f32.mrb[0].mxu0
        %v595 = vpop.f32.mrb[0].mxu0
        %v596 = vadd.f32 0.0, %v595
        %v597 = vpop.f32.mrb[0].mxu0
        %598 = vmatprep.mubr.bf16.mxu0 0
        %599 = vmatmul.mubr.bf16.gmra.mrb[0].mxu0 %v393
        %v600 = vpop.f32.mrb[0].mxu0
        %v601 = vadd.f32 0.0, %v600
        %v602 = vpop.f32.mrb[0].mxu0
        %v603 = vpop.f32.mrb[0].mxu0
        %v604 = vadd.f32 0.0, %v603
        %v605 = vpop.f32.mrb[0].mxu0
        %606 = vdwg.mxu0
        %v607 = vmul.f32 %v593, %v367
        %v608 = vmul.f32 %v596, %v368
        %v609 = vmul.f32 %v601, %v369
        %v610 = vmul.f32 %v604, %v370
        %s611 = scalar_lea.vmem %s254, 2
        %v612 = vld [vmem:[%s611] sm:$0x1]
        %v614 = vlaneseq
        %v615 = vshrl.u32 %v614, 7
        %v616 = vsub.s32 0, %v615
        %v617 = vrot.slane %v612, %v616
        %v619 = vadd.f32 %v607, %v617
        %v620 = vadd.f32 %v608, %v617
        %v621 = vadd.f32 %v609, %v617
        %v622 = vadd.f32 %v610, %v617
        %v623 = vxor.u32 %v455, 2147483648
        %v624 = vxor.u32 %v456, 2147483648
        %v625 = vxor.u32 %v457, 2147483648
        %v626 = vxor.u32 %v458, 2147483648
        %v627 = vmul.f32 %v623, 1.442695
        %v628 = vpow.pop %v627
        %v629 = vmul.f32 %v624, 1.442695
        %v630 = vpow.pop %v629
        %v631 = vmul.f32 %v625, 1.442695
        %v632 = vpow.pop %v631
        %v633 = vmul.f32 %v626, 1.442695
        %v634 = vpow.pop %v633
        %v635 = vadd.f32 %v628, 1.0
        %v636 = vadd.f32 %v630, 1.0
        %v637 = vadd.f32 %v632, 1.0
        %v638 = vadd.f32 %v634, 1.0
        %v639 = vrcp.pop %v635
        %v640 = vmul.f32 1.0, %v639
        %v641 = vrcp.pop %v636
        %v642 = vmul.f32 1.0, %v641
        %v643 = vrcp.pop %v637
        %v644 = vmul.f32 1.0, %v643
        %v645 = vrcp.pop %v638
        %v646 = vmul.f32 1.0, %v645
        %v647 = vxor.u32 %v537, 2147483648
        %v648 = vxor.u32 %v538, 2147483648
        %v649 = vxor.u32 %v539, 2147483648
        %v650 = vxor.u32 %v540, 2147483648
        %v651 = vmul.f32 %v647, 1.442695
        %v652 = vpow.pop %v651
        %v653 = vmul.f32 %v648, 1.442695
        %v654 = vpow.pop %v653
        %v655 = vmul.f32 %v649, 1.442695
        %v656 = vpow.pop %v655
        %v657 = vmul.f32 %v650, 1.442695
        %v658 = vpow.pop %v657
        %v659 = vadd.f32 %v652, 1.0
        %v660 = vadd.f32 %v654, 1.0
        %v661 = vadd.f32 %v656, 1.0
        %v662 = vadd.f32 %v658, 1.0
        %v663 = vrcp.pop %v659
        %v664 = vmul.f32 1.0, %v663
        %v665 = vrcp.pop %v660
        %v666 = vmul.f32 1.0, %v665
        %v667 = vrcp.pop %v661
        %v668 = vmul.f32 1.0, %v667
        %v669 = vrcp.pop %v662
        %v670 = vmul.f32 1.0, %v669
        %v671 = vmul.f32 %v537, %v664
        %v672 = vmul.f32 %v538, %v666
        %v673 = vmul.f32 %v539, %v668
        %v674 = vmul.f32 %v540, %v670
        %v675 = vxor.u32 %v619, 2147483648
        %v676 = vxor.u32 %v620, 2147483648
        %v677 = vxor.u32 %v621, 2147483648
        %v678 = vxor.u32 %v622, 2147483648
        %v679 = vmul.f32 %v675, 1.442695
        %v680 = vpow.pop %v679
        %v681 = vmul.f32 %v676, 1.442695
        %v682 = vpow.pop %v681
        %v683 = vmul.f32 %v677, 1.442695
        %v684 = vpow.pop %v683
        %v685 = vmul.f32 %v678, 1.442695
        %v686 = vpow.pop %v685
        %v687 = vadd.f32 %v680, 1.0
        %v688 = vadd.f32 %v682, 1.0
        %v689 = vadd.f32 %v684, 1.0
        %v690 = vadd.f32 %v686, 1.0
        %v691 = vrcp.pop %v687
        %v692 = vmul.f32 1.0, %v691
        %v693 = vrcp.pop %v688
        %v694 = vmul.f32 1.0, %v693
        %v695 = vrcp.pop %v689
        %v696 = vmul.f32 1.0, %v695
        %v697 = vrcp.pop %v690
        %v698 = vmul.f32 1.0, %v697
        %v699 = vsub.f32 1.0, %v640
        %v700 = vsub.f32 1.0, %v642
        %v701 = vsub.f32 1.0, %v644
        %v702 = vsub.f32 1.0, %v646
        %v703 = vmul.f32 %v699, %v671
        %v704 = vmul.f32 %v700, %v672
        %v705 = vmul.f32 %v701, %v673
        %v706 = vmul.f32 %v702, %v674
        %vm711 = vcmask 1040384
        %v712 = vrot.slane %v640, 7
        %v713 = vrot.slane %v642, 7
        %v714 = vsel %vm711, %v712, %v713
        %v715 = vrot.slane %v644, 7
        %v716 = vrot.slane %v646, 7
        %v717 = vsel %vm711, %v715, %v716
        %v722 = vsel %vm711, 1.0, %v712
        %v723 = vsel %vm711, 1.0, %v715
        %v728 = vrot.slane %v703, 7
        %v729 = vrot.slane %v704, 7
        %v730 = vsel %vm711, %v728, %v729
        %v731 = vrot.slane %v705, 7
        %v732 = vrot.slane %v706, 7
        %v733 = vsel %vm711, %v731, %v732
        %v738 = vsel %vm711, 0.0, %v728
        %v739 = vsel %vm711, 0.0, %v731
        %v740 = vmul.f32 %v640, %v722
        %v741 = vmul.f32 %v642, %v714
        %v742 = vmul.f32 %v644, %v723
        %v743 = vmul.f32 %v646, %v717
        %v744 = vmul.f32 %v640, %v738
        %v745 = vmul.f32 %v642, %v730
        %v746 = vmul.f32 %v644, %v739
        %v747 = vmul.f32 %v646, %v733
        %v748 = vadd.f32 %v744, %v703
        %v749 = vadd.f32 %v745, %v704
        %v750 = vadd.f32 %v746, %v705
        %v751 = vadd.f32 %v747, %v706
        %vm756 = vcmask 1041408
        %v757 = vrot.slane %v740, 6
        %v758 = vrot.slane %v741, 6
        %v759 = vsel %vm756, %v757, %v758
        %v760 = vrot.slane %v742, 6
        %v761 = vrot.slane %v743, 6
        %v762 = vsel %vm756, %v760, %v761
        %v767 = vsel %vm756, 1.0, %v757
        %v768 = vsel %vm756, 1.0, %v760
        %v773 = vrot.slane %v748, 6
        %v774 = vrot.slane %v749, 6
        %v775 = vsel %vm756, %v773, %v774
        %v776 = vrot.slane %v750, 6
        %v777 = vrot.slane %v751, 6
        %v778 = vsel %vm756, %v776, %v777
        %v783 = vsel %vm756, 0.0, %v773
        %v784 = vsel %vm756, 0.0, %v776
        %v785 = vmul.f32 %v740, %v767
        %v786 = vmul.f32 %v741, %v759
        %v787 = vmul.f32 %v742, %v768
        %v788 = vmul.f32 %v743, %v762
        %v789 = vmul.f32 %v740, %v783
        %v790 = vmul.f32 %v741, %v775
        %v791 = vmul.f32 %v742, %v784
        %v792 = vmul.f32 %v743, %v778
        %v793 = vadd.f32 %v789, %v748
        %v794 = vadd.f32 %v790, %v749
        %v795 = vadd.f32 %v791, %v750
        %v796 = vadd.f32 %v792, %v751
        %vm801 = vcmask 1043456
        %v802 = vrot.slane %v785, 4
        %v803 = vrot.slane %v786, 4
        %v804 = vsel %vm801, %v802, %v803
        %v805 = vrot.slane %v787, 4
        %v806 = vrot.slane %v788, 4
        %v807 = vsel %vm801, %v805, %v806
        %v812 = vsel %vm801, 1.0, %v802
        %v813 = vsel %vm801, 1.0, %v805
        %v818 = vrot.slane %v793, 4
        %v819 = vrot.slane %v794, 4
        %v820 = vsel %vm801, %v818, %v819
        %v821 = vrot.slane %v795, 4
        %v822 = vrot.slane %v796, 4
        %v823 = vsel %vm801, %v821, %v822
        %v828 = vsel %vm801, 0.0, %v818
        %v829 = vsel %vm801, 0.0, %v821
        %v830 = vmul.f32 %v785, %v812
        %v831 = vmul.f32 %v786, %v804
        %v832 = vmul.f32 %v787, %v813
        %v833 = vmul.f32 %v788, %v807
        %v834 = vmul.f32 %v785, %v828
        %v835 = vmul.f32 %v786, %v820
        %v836 = vmul.f32 %v787, %v829
        %v837 = vmul.f32 %v788, %v823
        %v838 = vadd.f32 %v834, %v793
        %v839 = vadd.f32 %v835, %v794
        %v840 = vadd.f32 %v836, %v795
        %v841 = vadd.f32 %v837, %v796
        %v842 = vmul.f32 %v831, %v830
        %v843 = vmul.f32 %v833, %v832
        %v844 = vmul.f32 %v830, 0.0
        %v845 = vmul.f32 %v831, %v838
        %v846 = vmul.f32 %v832, 0.0
        %v847 = vmul.f32 %v833, %v840
        %v848 = vadd.f32 %v844, %v838
        %v849 = vadd.f32 %v845, %v839
        %v850 = vadd.f32 %v846, %v840
        %v851 = vadd.f32 %v847, %v841
        %v852 = vld [vmem:[#allocation2] sm:$0x1]
        %v853 = vld [vmem:[#allocation2 + $0x1] sm:$0x1]
        %v856 = vlaneseq
        %v857 = vshrl.u32 %v856, 7
        %v858 = vsub.s32 0, %v857
        %v859 = vrot.slane %v852, %v858
        %v860 = vlaneseq
        %v861 = vshrl.u32 %v860, 7
        %v862 = vsub.s32 0, %v861
        %v863 = vrot.slane %v853, %v862
        %v866 = vmul.f32 %v830, %v859
        %v867 = vmul.f32 %v842, %v859
        %v868 = vmul.f32 %v832, %v863
        %v869 = vmul.f32 %v843, %v863
        %v870 = vadd.f32 %v866, %v848
        %v871 = vadd.f32 %v867, %v849
        %v872 = vadd.f32 %v868, %v850
        %v873 = vadd.f32 %v869, %v851
        %v874 = vmul.f32 %v692, %v870
        %v875 = vmul.f32 %v694, %v871
        %v876 = vmul.f32 %v696, %v872
        %v877 = vmul.f32 %v698, %v873
        %878 = vst.msk [vmem:[%s249] sm:$0xff] %vm269, %v874
        %879 = vst.msk [vmem:[%s249 + $0x8] sm:$0xff] %vm269, %v875
        %880 = vst.msk [vmem:[%s249 + $0x10] sm:$0xff] %vm269, %v876
        %881 = vst.msk [vmem:[%s249 + $0x18] sm:$0xff] %vm269, %v877
        %vm882 = vcmask 261127
        %883 = vst.msk [vmem:[#allocation2 - $0x7] sm:$0x80] %vm882, %v871
        %884 = vst.msk [vmem:[#allocation2 - $0x6] sm:$0x80] %vm882, %v873
        %s885 = sand.u32 %s132, 1
        %s886 = scalar_lea.sflag [#allocation5], %s885
        %s887 = sand.u32 %s132, 1
        %s888 = smul.addr %s887, 32
        %s889 = scalar_lea.vmem [#allocation8], %s888
        // Predicated region
        $region45: #{tpu_custom_call.1} parent=31 // pred_check
          %p890 = pneg %p142
        $region46: #{tpu_custom_call.1} parent=31 // pred_check_branch
          %892 = sbr.rel (%p890) target = $region48
        $region47: #{tpu_custom_call.1} parent=31 // pred_region
          %s893 = smul.u32 2, %s26
          %s894 = smul.u32 2, %s28
          %s896 = ssub.s32 512, 512
          %897 = vsyncadd %s886, %s896
          %s898 = sadd.s32 %s27, %s894
          %s899 = smul.addr %s893, 2
          %s900 = sadd.s32 %s898, %s899
          %s901 = smul.addr %s900, 128
          %s902 = scalar_lea.hbm %s3, %s901
          %s903 = sshll.u32 %s889, 4
          %s904 = int_to_ptr.vmem [resolvable:$true] %s903
          %909 = dma.vmem_to_hbm [thread:$0]  %s904, 512, %s902, %s886, 128, 128, 8
        $region48: #{tpu_custom_call.1} parent=31 // pred_fallthru
          _
      $region32: #{tpu_custom_call.1} parent=5 // pred_fallthru
        _
      %p910 = scmp.le.s32.totalorder 2, %s16
      // Predicated region
      $region49: #{tpu_custom_call.1} parent=5 // pred_check
        %p911 = pneg %p910
      $region50: #{tpu_custom_call.1} parent=5 // pred_check_branch
        %913 = sbr.rel (%p911) target = $region52
      $region51: #{tpu_custom_call.1} parent=5 // pred_region
        %s914 = ssub.s32 %s16, 2
        // Predicated region
        $region53: #{tpu_custom_call.1} parent=51 // pred_check
          %p915 = pneg %p148
        $region54: #{tpu_custom_call.1} parent=51 // pred_check_branch
          %917 = sbr.rel (%p915) target = $region56
        $region55: #{tpu_custom_call.1} parent=51 // pred_region
          %s918 = sand.u32 %s133, 1
          %s919 = scalar_lea.sflag [#allocation5], %s918
          %s920 = sand.u32 %s133, 1
          %s921 = smul.addr %s920, 32
          %s922 = scalar_lea.vmem [#allocation8], %s921
          %923 = dma.done %s919, 512
        $region56: #{tpu_custom_call.1} parent=51 // pred_fallthru
          _
      $region52: #{tpu_custom_call.1} parent=5 // pred_fallthru
        _
    $region6: #{tpu_custom_call.1} parent=1 // loop_footer
      %s20 = sadd.s32 1, %s16
    $region7: #{tpu_custom_call.1} parent=1 // loop_footer_branch
      %15 = sbr.rel target = $region3
    $region8: #{tpu_custom_call.1} parent=1 // loop_exit
      _
    %924 = vsyncpa [#allocation4], 1
    %s925 = scalar_lea.sflag [#allocation4], 1
    %926 = vsyncpa %s925, 1
    %927 = vsyncpa [#allocation7], 1
    %928 = vsyncpa [#allocation5], 1
    %s929 = scalar_lea.sflag [#allocation5], 1
    %930 = vsyncpa %s929, 1

</llo_original>
